<compile_context>
chip_gen: v7x
topology: tpu7x:2x2x1
jax: 0.10.0
libtpu: 0.0.40
codegen_flags: <defaults>
</compile_context>

<pallas_src>
import functools

import jax
import jax.numpy as jnp
from jax.experimental import pallas as pl
from jax.experimental.pallas import tpu as pltpu


LANES = 128            # vreg lane width
SUBLANES = 8           # f32 sublane packing
MAX_CHUNK_ROWS = 8192  # 8192*128*4B = 4 MiB input block: safe (double-buffered)
                       # on v5e (16 MiB scoped), v6e (32 MiB), v7x (32 MiB).


def _mean_reduce_kernel(x_ref, o_ref, acc_ref, *, inv_k):
    """Grid-accumulated sum over a (chunk_rows, 128) block; finalize -> mean."""
    i = pl.program_id(0)

    @pl.when(i == 0)
    def _():
        acc_ref[...] = jnp.zeros_like(acc_ref)

    # Per-chunk f32 upcast (not whole-array) + blocked accumulation.
    x = x_ref[...].astype(jnp.float32)
    # (chunk_rows, 128) -> (1, 128) -> (1, 1); keep everything rank-2.
    partial = jnp.sum(x, axis=0, keepdims=True)
    acc_ref[...] += jnp.sum(partial, axis=1, keepdims=True)

    @pl.when(i == pl.num_programs(0) - 1)
    def _():
        # Single multiply by the hoisted 1/K constant (matches torch.mean).
        o_ref[...] = (acc_ref[...] * inv_k).astype(o_ref.dtype)


def fused_forward(x1):
    B, K, D = x1.shape
    if B != 1 or D != 1:
        # v3 = v2.view(1) requires exactly one element in v2 (B * D == 1).
        raise ValueError("forward requires x1 of shape (1, K, 1)")

    # Lay the K elements out lane- AND sublane-dense: (total_rows, 128),
    # rows a multiple of 8 and of the chunk size.  Zero padding does not
    # change the sum; we divide by the true K.
    rows = pl.cdiv(K, LANES)
    rows = pl.cdiv(rows, SUBLANES) * SUBLANES
    chunk_rows = min(MAX_CHUNK_ROWS, rows)
    total_rows = pl.cdiv(rows, chunk_rows) * chunk_rows
    num_blocks = total_rows // chunk_rows
    pad = total_rows * LANES - K

    x = x1.reshape(K)
    if pad:
        x = jnp.pad(x, (0, pad))
    x2d = x.reshape(total_rows, LANES)

    kernel = functools.partial(_mean_reduce_kernel, inv_k=1.0 / K)
    v1 = pl.pallas_call(
        kernel,
        out_shape=jax.ShapeDtypeStruct((1, 1), x1.dtype),      # v1 = (B, D)
        grid=(num_blocks,),
        in_specs=[pl.BlockSpec((chunk_rows, LANES), lambda i: (i, 0))],
        out_specs=pl.BlockSpec((1, 1), lambda i: (0, 0)),       # accumulator tile
        scratch_shapes=[pltpu.VMEM((1, 1), jnp.float32)],
        compiler_params=pltpu.CompilerParams(
            dimension_semantics=("arbitrary",)),                # reduction axis
    )(x2d)

    # v2 (1x1 permute) and v3 ((1,1)->(1,) view) are zero-cost metadata ops
    # under jit; deriving them here avoids two extra kernel-output DMAs.
    v2 = jnp.transpose(v1, (1, 0))
    v3 = v2.reshape((1,))
    return v1, v2, v3


# One jit over the whole forward: a single fused dispatch around the kernel;
# the wrapper reshape/pad/transpose/view all fuse or fold away.
model_forward = jax.jit(fused_forward)


if __name__ == "__main__":
    key = jax.random.PRNGKey(0)

    # Shape consistent with the forward: (1, K, 1) so that v2.view(1) is valid.
    x1 = jax.random.normal(key, (1, 8, 1), dtype=jnp.float32)
    v1, v2, v3 = model_forward(x1)
    jax.block_until_ready((v1, v2, v3))

    ref_v1 = jnp.mean(x1, axis=1)              # (1, 1)
    ref_v2 = jnp.transpose(ref_v1, (1, 0))     # (1, 1)
    ref_v3 = ref_v2.reshape((1,))              # (1,)
    assert v1.shape == (1, 1) and v2.shape == (1, 1) and v3.shape == (1,)
    assert jnp.allclose(v1, ref_v1, atol=1e-6)
    assert jnp.allclose(v2, ref_v2, atol=1e-6)
    assert jnp.allclose(v3, ref_v3, atol=1e-6)

    # Exercise the padded (8,128)-dense path with a K that is not a multiple
    # of 128 (still one grid step; the gridded accumulator kicks in for K
    # beyond 8192*128 elements).
    x1b = jax.random.normal(jax.random.PRNGKey(1), (1, 1000, 1), dtype=jnp.float32)
    v1b, v2b, v3b = model_forward(x1b)
    jax.block_until_ready((v1b, v2b, v3b))
    assert jnp.allclose(v1b, jnp.mean(x1b, axis=1), atol=1e-5)
    assert jnp.allclose(v3b, jnp.mean(x1b, axis=1).reshape((1,)), atol=1e-5)

    print("KERNEL_OK")
</pallas_src>

<mosaic_0001>
module attributes {stable_mosaic.version = 11 : i64} {
  func.func @_mean_reduce_kernel(%arg0: i32, %arg1: memref<8x128xf32, #tpu.memory_space<vmem>>, %arg2: memref<1x1xf32, #tpu.memory_space<vmem>>, %arg3: memref<1x1xf32, #tpu.memory_space<vmem>>) attributes {dimension_semantics = [#tpu.dimension_semantics<arbitrary>], iteration_bounds = array<i64: 1>, scalar_prefetch = 0 : i64, scratch_operands = 1 : i64, tpu.core_type = #tpu.core_type<tc>, window_params = [{transform_indices = @transform_0, window_bounds = array<i64: 8, 128>}, {pipeline_mode = #tpu.pipeline_mode<synchronous>, transform_indices = @transform_1, window_bounds = array<i64: 1, 1>}]} {
    %c0_i32 = arith.constant 0 : i32
    %0 = arith.cmpi eq, %arg0, %c0_i32 : i32
    %1 = arith.extui %0 : i1 to i32
    %c0_i32_0 = arith.constant 0 : i32
    %2 = arith.cmpi ne, %1, %c0_i32_0 : i32
    scf.if %2 {
      %cst_9 = arith.constant 0.000000e+00 : f32
      %14 = vector.broadcast %cst_9 : f32 to vector<1x1xf32>
      %c0_10 = arith.constant 0 : index
      %c0_11 = arith.constant 0 : index
      %15 = vector.load %arg3[%c0_10, %c0_11] : memref<1x1xf32, #tpu.memory_space<vmem>>, vector<1x1xf32>
      tpu.vector_store %arg3[%c0_10, %c0_11], %14 {strides = array<i32>} : memref<1x1xf32, #tpu.memory_space<vmem>>, vector<1x1xf32>,
    } else {
    }
    %c0 = arith.constant 0 : index
    %c0_1 = arith.constant 0 : index
    %3 = vector.load %arg1[%c0, %c0_1] : memref<8x128xf32, #tpu.memory_space<vmem>>, vector<8x128xf32>
    %cst = arith.constant dense<0.000000e+00> : vector<128xf32>
    %4 = vector.multi_reduction <add>, %3, %cst [0] : vector<8x128xf32> to vector<128xf32>
    %5 = vector.shape_cast %4 : vector<128xf32> to vector<1x128xf32>
    %c0_2 = arith.constant 0 : index
    %c0_3 = arith.constant 0 : index
    %6 = vector.load %arg3[%c0_2, %c0_3] : memref<1x1xf32, #tpu.memory_space<vmem>>, vector<1x1xf32>
    %cst_4 = arith.constant dense<0.000000e+00> : vector<1xf32>
    %7 = vector.multi_reduction <add>, %5, %cst_4 [1] : vector<1x128xf32> to vector<1xf32>
    %8 = vector.shape_cast %7 : vector<1xf32> to vector<1x1xf32>
    %9 = arith.addf %6, %8 : vector<1x1xf32>
    %c0_5 = arith.constant 0 : index
    %c0_6 = arith.constant 0 : index
    %10 = vector.load %arg3[%c0_5, %c0_6] : memref<1x1xf32, #tpu.memory_space<vmem>>, vector<1x1xf32>
    tpu.vector_store %arg3[%c0_5, %c0_6], %9 {strides = array<i32>} : memref<1x1xf32, #tpu.memory_space<vmem>>, vector<1x1xf32>,
    %c0_i32_7 = arith.constant 0 : i32
    %11 = arith.cmpi eq, %arg0, %c0_i32_7 : i32
    %12 = arith.extui %11 : i1 to i32
    %c0_i32_8 = arith.constant 0 : i32
    %13 = arith.cmpi ne, %12, %c0_i32_8 : i32
    scf.if %13 {
      %c0_9 = arith.constant 0 : index
      %c0_10 = arith.constant 0 : index
      %14 = vector.load %arg3[%c0_9, %c0_10] : memref<1x1xf32, #tpu.memory_space<vmem>>, vector<1x1xf32>
      %cst_11 = arith.constant 1.250000e-01 : f32
      %15 = vector.broadcast %cst_11 : f32 to vector<1x1xf32>
      %16 = arith.mulf %14, %15 : vector<1x1xf32>
      %c0_12 = arith.constant 0 : index
      %c0_13 = arith.constant 0 : index
      %17 = vector.load %arg2[%c0_12, %c0_13] : memref<1x1xf32, #tpu.memory_space<vmem>>, vector<1x1xf32>
      tpu.vector_store %arg2[%c0_12, %c0_13], %16 {strides = array<i32>} : memref<1x1xf32, #tpu.memory_space<vmem>>, vector<1x1xf32>,
    } else {
    }
    return
  }
  func.func @transform_0(%arg0: i32) -> (i32, i32) {
    %c0_i32 = arith.constant 0 : i32
    %c0_i32_0 = arith.constant 0 : i32
    return %arg0, %c0_i32 : i32, i32
  }
  func.func @transform_1(%arg0: i32) -> (i32, i32) {
    %c0_i32 = arith.constant 0 : i32
    %c0_i32_0 = arith.constant 0 : i32
    %c0_i32_1 = arith.constant 0 : i32
    return %c0_i32, %c0_i32_0 : i32, i32
  }
}

</mosaic_0001>

<llo_original>
// kernel: fused_forward.1
$region0: #{fused_forward.1}
  #allocation0 [shape = 'u32[]', space=smem, size = 0x4, offset = 0x4, fixed_abs, tag = 'smem constant byte address 0x4 - core index']
  #allocation1 [shape = 'u32[144,128]{1,0:T(1,128)}', space=vmem, size = 0x12000, scoped, tag = 'internal scratch']
  #allocation2 [shape = 'f32[1,1]{1,0:T(1,128)}', space=vmem, size = 0x200, scoped, tag = 'scratch operand']
  %s0 = inlined_call_operand.vmem [shape: f32[8,128], index: 0, kind: input, shape index: {}]
  %s1 = inlined_call_operand.hbm [shape: f32[1,1], index: 1, kind: output, shape index: {}]
  %s2 = sld [smem:[#allocation0]]
  $region22: #{fused_forward.1} parent=0
    _
  %s4 = ssub.s32 1, %s2
  %s5 = scalar_select 0, %s4, %s2
  $region1: #{fused_forward.1} parent=0
    #allocation3 [shape = 'u8[512]{0}', space=vmem, size = 0x400, scoped, tag = 'output window, operand 0, single buffered']
    #allocation4 [shape = 's32[1]{0}', space=sflag, size = 0x4, scoped, tag = 'scoped memory for fused_forward.1']
    %6 = vsyncpa [#allocation4], 0
    // Predicated region
    $region2: #{fused_forward.1} parent=1 // pred_check
      _
    $region3: #{fused_forward.1} parent=1 // pred_check_branch
      %8 = sbr.rel (0) target = $region5
    $region4: #{fused_forward.1} parent=1 // pred_region
      _
    $region5: #{fused_forward.1} parent=1 // pred_fallthru
      _
    %p9 = scmp.eq.s32.totalorder 0, 0
    // Predicated region
    $region6: #{fused_forward.1} parent=1 // pred_check
      %p10 = pneg %p9
    $region7: #{fused_forward.1} parent=1 // pred_check_branch
      %12 = sbr.rel (%p10) target = $region9
    $region8: #{fused_forward.1} parent=1 // pred_region
      %vm13 = vcmask 0
      %14 = vst.msk [vmem:[#allocation2] sm:$0x1] %vm13, 0.0
    $region9: #{fused_forward.1} parent=1 // pred_fallthru
      _
    %v15 = vld [vmem:[%s0] sm:$0xff]
    %v16 = vrot.slane %v15, 4
    %v17 = vadd.f32 %v15, %v16
    %v18 = vrot.slane %v17, 2
    %v19 = vadd.f32 %v17, %v18
    %v20 = vrot.slane %v19, 1
    %v21 = vadd.f32 %v19, %v20
    %v22 = vld [vmem:[#allocation2] sm:$0x1]
    %23 = vadd.xlane.f32.xlu0 %v21
    %v24 = vpop.xlane.xlu0 %23
    %v25 = vadd.f32 %v22, %v24
    %vm26 = vcmask 0
    %27 = vst.msk [vmem:[#allocation2] sm:$0x1] %vm26, %v25
    // Predicated region
    $region10: #{fused_forward.1} parent=1 // pred_check
      %p28 = pneg %p9
    $region11: #{fused_forward.1} parent=1 // pred_check_branch
      %30 = sbr.rel (%p28) target = $region13
    $region12: #{fused_forward.1} parent=1 // pred_region
      %v31 = vld [vmem:[#allocation2] sm:$0x1]
      %v32 = vmul.f32 %v31, 0.125
      %33 = vst.msk [vmem:[#allocation3] sm:$0x1] %vm26, %v32
    $region13: #{fused_forward.1} parent=1 // pred_fallthru
      _
    // Predicated region
    $region14: #{fused_forward.1} parent=1 // pred_check
      _
    $region15: #{fused_forward.1} parent=1 // pred_check_branch
      %35 = sbr.rel (0) target = $region17
    $region16: #{fused_forward.1} parent=1 // pred_region
      %s37 = ssub.s32 16, 16
      %38 = vsyncadd [#allocation4], %s37
      %s40 = sshll.u32 [#allocation3], 4
      %s41 = int_to_ptr.vmem [resolvable:$true] %s40
      %43 = dma.vmem_to_hbm [thread:$0]  %s41, 16, %s1, [#allocation4]
    $region17: #{fused_forward.1} parent=1 // pred_fallthru
      _
    // Predicated region
    $region18: #{fused_forward.1} parent=1 // pred_check
      _
    $region19: #{fused_forward.1} parent=1 // pred_check_branch
      %45 = sbr.rel (0) target = $region21
    $region20: #{fused_forward.1} parent=1 // pred_region
      %46 = dma.done [#allocation4], 16
    $region21: #{fused_forward.1} parent=1 // pred_fallthru
      _
    %47 = vsyncpa [#allocation4], 1

</llo_original>
